<compile_context>
chip_gen: v7x
topology: tpu7x:2x2x1
jax: 0.10.0
libtpu: 0.0.40
codegen_flags: <defaults>
</compile_context>

<pallas_src>
import functools
import math

import jax
import jax.numpy as jnp
from jax.experimental import pallas as pl
from jax.experimental.pallas import tpu as pltpu

_SELU_ALPHA = 1.6732632423543772
_SELU_SCALE = 1.0507009873554805
_SUBLANE = 8


def _round_up(x, m):
    return ((x + m - 1) // m) * m


def _fused_decoder_kernel(x_ref, *refs, n_layers, compute_dtype):
    """refs = (w_0, b_0, w_1, b_1, ..., w_{L-1}, b_{L-1}, o_ref).

    Static Python unroll over layers; intermediate activations stay as traced
    values (vregs/VMEM) and never touch HBM.
    """
    o_ref = refs[-1]
    wb = refs[:-1]
    h = x_ref[...]                                   # [tb, K0] compute_dtype
    for i in range(n_layers):
        w = wb[2 * i][...]                           # [K_i, N_i] compute_dtype
        b = wb[2 * i + 1][...].astype(jnp.float32)   # [1, N_i], row-broadcast
        acc = jnp.dot(h.astype(compute_dtype), w,
                      preferred_element_type=jnp.float32)
        acc = acc + b
        if i != n_layers - 1:
            # SELU in f32; exp argument clamped so the untaken where-branch
            # never produces inf.  exp sits on the EUP slot (essentially free
            # next to the HBM stream).
            # TODO(synk): switch to expm1 when Mosaic exposes a direct lowering.
            neg = _SELU_ALPHA * (jnp.exp(jnp.minimum(acc, 0.0)) - 1.0)
            acc = _SELU_SCALE * jnp.where(acc > 0.0, acc, neg)
        h = acc
        # Dropout(p) in eval mode is identity -> nothing to do.
        # TODO(synk): training-mode dropout would need pltpu.prng_* masking.
    o_ref[...] = h.astype(o_ref.dtype)


def prepare_decoder_params(params, compute_dtype=jnp.bfloat16):
    """One-time parameter prep (hoisted out of the forward pass).

    Casts weights to compute_dtype and biases to f32 [1, N]; keeps TRUE shapes
    (no padding).  params: list of (w [K_i, N_i], b [N_i]) stored [in, out]
    (transposed vs torch nn.Linear so the kernel computes x @ W + b).
    """
    flat = []
    dims = [params[0][0].shape[0]]
    for (w, b) in params:
        kin, kout = w.shape
        assert kin == dims[-1], (kin, dims[-1])
        dims.append(kout)
        flat.append(jnp.asarray(w, compute_dtype))
        flat.append(jnp.asarray(b, jnp.float32).reshape(1, kout))
    return tuple(flat), tuple(dims)


def ae_decoder_forward(x, prepared, *, compute_dtype=jnp.bfloat16,
                       tile_b=2048):
    """Fused AE_Decoder forward.

    x: [B, K0]; prepared: output of prepare_decoder_params.
    Returns y: [B, N_last] in x's original dtype.
    """
    flat, dims = prepared
    n_layers = len(flat) // 2
    assert n_layers >= 1
    B, K0 = x.shape
    assert K0 == dims[0], (K0, dims[0])
    out_dtype = x.dtype
    out_dim = dims[-1]

    # Stream x in compute_dtype (halves the dominant HBM read on the bf16
    # path; the cast fuses upstream under jit, or pass bf16 x to avoid it).
    if x.dtype != compute_dtype:
        x = x.astype(compute_dtype)

    # Batch tiling only.  Large tiles amortize per-step overhead; cap so we
    # get >= 2 grid steps whenever B allows (v7x megacore); multiple of 8
    # sublanes.  No batch padding: ragged last block handled by Pallas.
    tb = max(_SUBLANE, min(tile_b, _round_up(pl.cdiv(B, 2), _SUBLANE)))
    grid = (pl.cdiv(B, tb),)

    x_spec = pl.BlockSpec((tb, K0), lambda i: (i, 0))
    wb_specs = []
    for li in range(n_layers):
        # Constant block index -> DMA'd once, VMEM-resident; single-buffered.
        wb_specs.append(pl.BlockSpec((dims[li], dims[li + 1]),
                                     lambda i: (0, 0),
                                     pipeline_mode=pl.Buffered(1)))
        wb_specs.append(pl.BlockSpec((1, dims[li + 1]),
                                     lambda i: (0, 0),
                                     pipeline_mode=pl.Buffered(1)))

    kernel = functools.partial(_fused_decoder_kernel,
                               n_layers=n_layers,
                               compute_dtype=compute_dtype)

    return pl.pallas_call(
        kernel,
        out_shape=jax.ShapeDtypeStruct((B, out_dim), out_dtype),
        grid_spec=pltpu.PrefetchScalarGridSpec(
            num_scalar_prefetch=0,
            grid=grid,
            in_specs=[x_spec] + wb_specs,
            out_specs=pl.BlockSpec((tb, out_dim), lambda i: (i, 0)),
        ),
        compiler_params=pltpu.CompilerParams(
            dimension_semantics=("parallel",)),
    )(x, *flat)


def make_ae_decoder_params(key, hparam, lat_, out_, dtype=jnp.float32):
    """nn.Linear default init (uniform +-1/sqrt(fan_in)), AE_Decoder sizes."""
    params = []
    n_layers = hparam["N_LAYERS"]
    f = hparam["AE_F_ENCODING"]
    cur_lat = lat_
    for i in range(n_layers):
        cur_lat = cur_lat if i == 0 else int(cur_lat * f)
        dec_ = out_ if i == n_layers - 1 else int(cur_lat * f)
        key, kw, kb = jax.random.split(key, 3)
        bound = 1.0 / math.sqrt(cur_lat)
        w = jax.random.uniform(kw, (cur_lat, dec_), dtype, -bound, bound)
        bias = jax.random.uniform(kb, (dec_,), dtype, -bound, bound)
        params.append((w, bias))
    return params


def ae_decoder_reference(x, params, compute_dtype=jnp.float32):
    """Pure-JAX reference (optionally with bf16 matmul operands)."""
    n_layers = len(params)
    y = x.astype(jnp.float32)
    for i, (w, b) in enumerate(params):
        y = jnp.dot(y.astype(compute_dtype), w.astype(compute_dtype),
                    preferred_element_type=jnp.float32) + b.astype(jnp.float32)
        if i != n_layers - 1:
            y = _SELU_SCALE * jnp.where(
                y > 0.0, y, _SELU_ALPHA * (jnp.exp(jnp.minimum(y, 0.0)) - 1.0))
    return y


if __name__ == "__main__":
    hparam = {"N_LAYERS": 3, "AE_F_ENCODING": 2.0, "DROPOUT_P": 0.1}
    lat_ = 32    # latent dim fed into the decoder
    out_ = 16    # reconstruction dim
    batch = 8

    key = jax.random.PRNGKey(0)
    key, kx = jax.random.split(key)
    x = jax.random.normal(kx, (batch, lat_), jnp.float32)
    params = make_ae_decoder_params(key, hparam, lat_, out_)

    prep_f32 = prepare_decoder_params(params, jnp.float32)
    prep_bf16 = prepare_decoder_params(params, jnp.bfloat16)

    # 1) f32-operand path: tight correctness check vs pure-JAX f32 reference.
    y32 = jax.block_until_ready(
        ae_decoder_forward(x, prep_f32, compute_dtype=jnp.float32))
    y32_ref = ae_decoder_reference(x, params, jnp.float32)
    assert y32.shape == (batch, out_), y32.shape
    assert y32.dtype == x.dtype, y32.dtype
    assert jnp.allclose(y32, y32_ref, atol=1e-4, rtol=1e-4), float(
        jnp.max(jnp.abs(y32 - y32_ref)))

    # 2) bf16-operand path (default; v6e/v7x MXU-friendly).
    ybf = jax.block_until_ready(ae_decoder_forward(x, prep_bf16))
    ybf_ref = ae_decoder_reference(x, params, jnp.bfloat16)
    assert ybf.shape == (batch, out_), ybf.shape
    assert jnp.allclose(ybf, ybf_ref, atol=1e-2, rtol=1e-2), float(
        jnp.max(jnp.abs(ybf - ybf_ref)))

    # 3) Multi-tile grid + ragged last batch block (no host-side padding).
    key, kx2 = jax.random.split(key)
    xb = jax.random.normal(kx2, (200, lat_), jnp.float32)
    yb = jax.block_until_ready(ae_decoder_forward(xb, prep_bf16))
    yb_ref = ae_decoder_reference(xb, params, jnp.bfloat16)
    assert yb.shape == (200, out_), yb.shape
    assert jnp.allclose(yb, yb_ref, atol=1e-2, rtol=1e-2), float(
        jnp.max(jnp.abs(yb - yb_ref)))

    # 4) bf16 input streams straight through (no wrapper cast at all).
    ybf_in = jax.block_until_ready(
        ae_decoder_forward(x.astype(jnp.bfloat16), prep_bf16))
    assert ybf_in.shape == (batch, out_) and ybf_in.dtype == jnp.bfloat16

    print("KERNEL_OK")
</pallas_src>

<mosaic_0001>
module attributes {stable_mosaic.version = 11 : i64} {
  func.func @_fused_decoder_kernel(%arg0: i32, %arg1: memref<8x32xf32, #tpu.memory_space<vmem>>, %arg2: memref<32x64xf32, #tpu.memory_space<vmem>>, %arg3: memref<1x64xf32, #tpu.memory_space<vmem>>, %arg4: memref<64x128xf32, #tpu.memory_space<vmem>>, %arg5: memref<1x128xf32, #tpu.memory_space<vmem>>, %arg6: memref<128x16xf32, #tpu.memory_space<vmem>>, %arg7: memref<1x16xf32, #tpu.memory_space<vmem>>, %arg8: memref<8x16xf32, #tpu.memory_space<vmem>>) attributes {dimension_semantics = [#tpu.dimension_semantics<parallel>], iteration_bounds = array<i64: 1>, scalar_prefetch = 0 : i64, scratch_operands = 0 : i64, tpu.core_type = #tpu.core_type<tc>, window_params = [{transform_indices = @transform_0, window_bounds = array<i64: 8, 32>}, {pipeline_mode = #tpu.pipeline_mode<synchronous>, transform_indices = @transform_1, window_bounds = array<i64: 32, 64>}, {pipeline_mode = #tpu.pipeline_mode<synchronous>, transform_indices = @transform_2, window_bounds = array<i64: 1, 64>}, {pipeline_mode = #tpu.pipeline_mode<synchronous>, transform_indices = @transform_3, window_bounds = array<i64: 64, 128>}, {pipeline_mode = #tpu.pipeline_mode<synchronous>, transform_indices = @transform_4, window_bounds = array<i64: 1, 128>}, {pipeline_mode = #tpu.pipeline_mode<synchronous>, transform_indices = @transform_5, window_bounds = array<i64: 128, 16>}, {pipeline_mode = #tpu.pipeline_mode<synchronous>, transform_indices = @transform_6, window_bounds = array<i64: 1, 16>}, {transform_indices = @transform_7, window_bounds = array<i64: 8, 16>}]} {
    %c0 = arith.constant 0 : index
    %c0_0 = arith.constant 0 : index
    %0 = vector.load %arg1[%c0, %c0_0] : memref<8x32xf32, #tpu.memory_space<vmem>>, vector<8x32xf32>
    %c0_1 = arith.constant 0 : index
    %c0_2 = arith.constant 0 : index
    %1 = vector.load %arg2[%c0_1, %c0_2] : memref<32x64xf32, #tpu.memory_space<vmem>>, vector<32x64xf32>
    %c0_3 = arith.constant 0 : index
    %c0_4 = arith.constant 0 : index
    %2 = vector.load %arg3[%c0_3, %c0_4] : memref<1x64xf32, #tpu.memory_space<vmem>>, vector<1x64xf32>
    %cst = arith.constant dense<0.000000e+00> : vector<8x64xf32>
    %3 = tpu.matmul %0, %1, %cst {dimension_numbers = #tpu.dot_dimension_numbers<[1], [0], [0], [1], [0, 0, 1, 1], [], []>} : vector<8x32xf32>, vector<32x64xf32>, vector<8x64xf32> -> vector<8x64xf32>
    %4 = vector.broadcast %2 : vector<1x64xf32> to vector<8x64xf32>
    %5 = arith.addf %3, %4 : vector<8x64xf32>
    %cst_5 = arith.constant 0.000000e+00 : f32
    %6 = vector.broadcast %cst_5 : f32 to vector<8x64xf32>
    %7 = arith.minimumf %5, %6 : vector<8x64xf32>
    %8 = math.exp %7 : vector<8x64xf32>
    %cst_6 = arith.constant 1.000000e+00 : f32
    %9 = vector.broadcast %cst_6 : f32 to vector<8x64xf32>
    %10 = arith.subf %8, %9 : vector<8x64xf32>
    %cst_7 = arith.constant 1.67326319 : f32
    %11 = vector.broadcast %cst_7 : f32 to vector<8x64xf32>
    %12 = arith.mulf %11, %10 : vector<8x64xf32>
    %cst_8 = arith.constant 0.000000e+00 : f32
    %13 = vector.broadcast %cst_8 : f32 to vector<8x64xf32>
    %14 = arith.cmpf ogt, %5, %13 : vector<8x64xf32>
    %15 = arith.select %14, %5, %12 : vector<8x64xi1>, vector<8x64xf32>
    %cst_9 = arith.constant 1.05070102 : f32
    %16 = vector.broadcast %cst_9 : f32 to vector<8x64xf32>
    %17 = arith.mulf %16, %15 : vector<8x64xf32>
    %c0_10 = arith.constant 0 : index
    %c0_11 = arith.constant 0 : index
    %18 = vector.load %arg4[%c0_10, %c0_11] : memref<64x128xf32, #tpu.memory_space<vmem>>, vector<64x128xf32>
    %c0_12 = arith.constant 0 : index
    %c0_13 = arith.constant 0 : index
    %19 = vector.load %arg5[%c0_12, %c0_13] : memref<1x128xf32, #tpu.memory_space<vmem>>, vector<1x128xf32>
    %cst_14 = arith.constant dense<0.000000e+00> : vector<8x128xf32>
    %20 = tpu.matmul %17, %18, %cst_14 {dimension_numbers = #tpu.dot_dimension_numbers<[1], [0], [0], [1], [0, 0, 1, 1], [], []>} : vector<8x64xf32>, vector<64x128xf32>, vector<8x128xf32> -> vector<8x128xf32>
    %21 = vector.broadcast %19 : vector<1x128xf32> to vector<8x128xf32>
    %22 = arith.addf %20, %21 : vector<8x128xf32>
    %cst_15 = arith.constant 0.000000e+00 : f32
    %23 = vector.broadcast %cst_15 : f32 to vector<8x128xf32>
    %24 = arith.minimumf %22, %23 : vector<8x128xf32>
    %25 = math.exp %24 : vector<8x128xf32>
    %cst_16 = arith.constant 1.000000e+00 : f32
    %26 = vector.broadcast %cst_16 : f32 to vector<8x128xf32>
    %27 = arith.subf %25, %26 : vector<8x128xf32>
    %cst_17 = arith.constant 1.67326319 : f32
    %28 = vector.broadcast %cst_17 : f32 to vector<8x128xf32>
    %29 = arith.mulf %28, %27 : vector<8x128xf32>
    %cst_18 = arith.constant 0.000000e+00 : f32
    %30 = vector.broadcast %cst_18 : f32 to vector<8x128xf32>
    %31 = arith.cmpf ogt, %22, %30 : vector<8x128xf32>
    %32 = arith.select %31, %22, %29 : vector<8x128xi1>, vector<8x128xf32>
    %cst_19 = arith.constant 1.05070102 : f32
    %33 = vector.broadcast %cst_19 : f32 to vector<8x128xf32>
    %34 = arith.mulf %33, %32 : vector<8x128xf32>
    %c0_20 = arith.constant 0 : index
    %c0_21 = arith.constant 0 : index
    %35 = vector.load %arg6[%c0_20, %c0_21] : memref<128x16xf32, #tpu.memory_space<vmem>>, vector<128x16xf32>
    %c0_22 = arith.constant 0 : index
    %c0_23 = arith.constant 0 : index
    %36 = vector.load %arg7[%c0_22, %c0_23] : memref<1x16xf32, #tpu.memory_space<vmem>>, vector<1x16xf32>
    %cst_24 = arith.constant dense<0.000000e+00> : vector<8x16xf32>
    %37 = tpu.matmul %34, %35, %cst_24 {dimension_numbers = #tpu.dot_dimension_numbers<[1], [0], [0], [1], [0, 0, 1, 1], [], []>} : vector<8x128xf32>, vector<128x16xf32>, vector<8x16xf32> -> vector<8x16xf32>
    %38 = vector.broadcast %36 : vector<1x16xf32> to vector<8x16xf32>
    %39 = arith.addf %37, %38 : vector<8x16xf32>
    %c0_25 = arith.constant 0 : index
    %c0_26 = arith.constant 0 : index
    %40 = vector.load %arg8[%c0_25, %c0_26] : memref<8x16xf32, #tpu.memory_space<vmem>>, vector<8x16xf32>
    tpu.vector_store %arg8[%c0_25, %c0_26], %39 {strides = array<i32>} : memref<8x16xf32, #tpu.memory_space<vmem>>, vector<8x16xf32>,
    return
  }
  func.func @transform_0(%arg0: i32) -> (i32, i32) {
    %c0_i32 = arith.constant 0 : i32
    %c0_i32_0 = arith.constant 0 : i32
    return %arg0, %c0_i32 : i32, i32
  }
  func.func @transform_1(%arg0: i32) -> (i32, i32) {
    %c0_i32 = arith.constant 0 : i32
    %c0_i32_0 = arith.constant 0 : i32
    %c0_i32_1 = arith.constant 0 : i32
    return %c0_i32, %c0_i32_0 : i32, i32
  }
  func.func @transform_2(%arg0: i32) -> (i32, i32) {
    %c0_i32 = arith.constant 0 : i32
    %c0_i32_0 = arith.constant 0 : i32
    %c0_i32_1 = arith.constant 0 : i32
    return %c0_i32, %c0_i32_0 : i32, i32
  }
  func.func @transform_3(%arg0: i32) -> (i32, i32) {
    %c0_i32 = arith.constant 0 : i32
    %c0_i32_0 = arith.constant 0 : i32
    %c0_i32_1 = arith.constant 0 : i32
    return %c0_i32, %c0_i32_0 : i32, i32
  }
  func.func @transform_4(%arg0: i32) -> (i32, i32) {
    %c0_i32 = arith.constant 0 : i32
    %c0_i32_0 = arith.constant 0 : i32
    %c0_i32_1 = arith.constant 0 : i32
    return %c0_i32, %c0_i32_0 : i32, i32
  }
  func.func @transform_5(%arg0: i32) -> (i32, i32) {
    %c0_i32 = arith.constant 0 : i32
    %c0_i32_0 = arith.constant 0 : i32
    %c0_i32_1 = arith.constant 0 : i32
    return %c0_i32, %c0_i32_0 : i32, i32
  }
  func.func @transform_6(%arg0: i32) -> (i32, i32) {
    %c0_i32 = arith.constant 0 : i32
    %c0_i32_0 = arith.constant 0 : i32
    %c0_i32_1 = arith.constant 0 : i32
    return %c0_i32, %c0_i32_0 : i32, i32
  }
  func.func @transform_7(%arg0: i32) -> (i32, i32) {
    %c0_i32 = arith.constant 0 : i32
    %c0_i32_0 = arith.constant 0 : i32
    return %arg0, %c0_i32 : i32, i32
  }
}

</mosaic_0001>

<llo_original>
// kernel: tpu_custom_call.1
$region0: #{tpu_custom_call.1}
  #allocation0 [shape = 'u32[]', space=smem, size = 0x4, offset = 0x4, fixed_abs, tag = 'smem constant byte address 0x4 - core index']
  #allocation1 [shape = 'u32[144,128]{1,0:T(1,128)}', space=vmem, size = 0x12000, scoped, tag = 'internal scratch']
  %s0 = inlined_call_operand.vmem [shape: f32[8,32], index: 0, kind: input, shape index: {}]
  %s1 = inlined_call_operand.vmem [shape: f32[32,64], index: 1, kind: input, shape index: {}]
  %s2 = inlined_call_operand.vmem [shape: f32[1,64], index: 2, kind: input, shape index: {}]
  %s3 = inlined_call_operand.vmem [shape: f32[64,128], index: 3, kind: input, shape index: {}]
  %s4 = inlined_call_operand.vmem [shape: f32[1,128], index: 4, kind: input, shape index: {}]
  %s5 = inlined_call_operand.vmem [shape: f32[128,16], index: 5, kind: input, shape index: {}]
  %s6 = inlined_call_operand.vmem [shape: f32[1,16], index: 6, kind: input, shape index: {}]
  %s7 = inlined_call_operand.hbm [shape: f32[8,16], index: 7, kind: output, shape index: {}]
  %s8 = sld [smem:[#allocation0]]
  $region38: #{tpu_custom_call.1} parent=0
    _
  %s10 = ssub.s32 1, %s8
  %s11 = scalar_select 0, %s10, %s8
  $region1: #{tpu_custom_call.1} parent=0
    #allocation2 [shape = 'u8[4096]{0}', space=vmem, size = 0x1000, scoped, tag = 'output window, operand 0, single buffered']
    #allocation3 [shape = 's32[1]{0}', space=sflag, size = 0x4, scoped, tag = 'scoped memory for tpu_custom_call.1']
    %12 = vsyncpa [#allocation3], 0
    // Predicated region
    $region2: #{tpu_custom_call.1} parent=1 // pred_check
      _
    $region3: #{tpu_custom_call.1} parent=1 // pred_check_branch
      %14 = sbr.rel (0) target = $region5
    $region4: #{tpu_custom_call.1} parent=1 // pred_region
      _
    $region5: #{tpu_custom_call.1} parent=1 // pred_fallthru
      _
    // Predicated region
    $region6: #{tpu_custom_call.1} parent=1 // pred_check
      _
    $region7: #{tpu_custom_call.1} parent=1 // pred_check_branch
      %16 = sbr.rel (0) target = $region9
    $region8: #{tpu_custom_call.1} parent=1 // pred_region
      _
    $region9: #{tpu_custom_call.1} parent=1 // pred_fallthru
      _
    // Predicated region
    $region10: #{tpu_custom_call.1} parent=1 // pred_check
      _
    $region11: #{tpu_custom_call.1} parent=1 // pred_check_branch
      %18 = sbr.rel (0) target = $region13
    $region12: #{tpu_custom_call.1} parent=1 // pred_region
      _
    $region13: #{tpu_custom_call.1} parent=1 // pred_fallthru
      _
    // Predicated region
    $region14: #{tpu_custom_call.1} parent=1 // pred_check
      _
    $region15: #{tpu_custom_call.1} parent=1 // pred_check_branch
      %20 = sbr.rel (0) target = $region17
    $region16: #{tpu_custom_call.1} parent=1 // pred_region
      _
    $region17: #{tpu_custom_call.1} parent=1 // pred_fallthru
      _
    // Predicated region
    $region18: #{tpu_custom_call.1} parent=1 // pred_check
      _
    $region19: #{tpu_custom_call.1} parent=1 // pred_check_branch
      %22 = sbr.rel (0) target = $region21
    $region20: #{tpu_custom_call.1} parent=1 // pred_region
      _
    $region21: #{tpu_custom_call.1} parent=1 // pred_fallthru
      _
    // Predicated region
    $region22: #{tpu_custom_call.1} parent=1 // pred_check
      _
    $region23: #{tpu_custom_call.1} parent=1 // pred_check_branch
      %24 = sbr.rel (0) target = $region25
    $region24: #{tpu_custom_call.1} parent=1 // pred_region
      _
    $region25: #{tpu_custom_call.1} parent=1 // pred_fallthru
      _
    // Predicated region
    $region26: #{tpu_custom_call.1} parent=1 // pred_check
      _
    $region27: #{tpu_custom_call.1} parent=1 // pred_check_branch
      %26 = sbr.rel (0) target = $region29
    $region28: #{tpu_custom_call.1} parent=1 // pred_region
      _
    $region29: #{tpu_custom_call.1} parent=1 // pred_fallthru
      _
    %v27 = vld [vmem:[%s0] sm:$0xff]
    %v28 = vld [vmem:[%s1] sm:$0xff]
    %v29 = vld [vmem:[%s1 + $0x8] sm:$0xff]
    %v30 = vld [vmem:[%s1 + $0x10] sm:$0xff]
    %v31 = vld [vmem:[%s1 + $0x18] sm:$0xff]
    %v32 = vld [vmem:[%s2] sm:$0x1]
    %v34 = vlaneseq
    %v35 = vshrl.u32 %v34, 7
    %v36 = vsub.s32 0, %v35
    %v37 = vrot.slane %v32, %v36
    %vm39 = vcmask 261120
    %v41 = vsel %vm39, %v27, 0
    %43 = vmatprep.subr.mxu0 0.0
    %44 = vmatpush1.msra.mxu0 %v28
    %45 = vmatprep.subr.mxu0 0.0
    %46 = vmatpush1.msra.mxu0 %v29
    %47 = vmatprep.subr.mxu0 0.0
    %48 = vmatpush1.msra.mxu0 %v30
    %49 = vmatprep.subr.mxu0 0.0
    %50 = vmatpush1.msra.mxu0 %v31
    %51 = vmatprep.subr.mxu0 0.0
    %52 = vmatpush1.msra.mxu0 0.0
    %53 = vmatprep.subr.mxu0 0.0
    %54 = vmatpush1.msra.mxu0 0.0
    %55 = vmatprep.subr.mxu0 0.0
    %56 = vmatpush1.msra.mxu0 0.0
    %57 = vmatprep.subr.mxu0 0.0
    %58 = vmatpush1.msra.mxu0 0.0
    %59 = vmatprep.subr.mxu0 0.0
    %60 = vmatpush1.msra.mxu0 0.0
    %61 = vmatprep.subr.mxu0 0.0
    %62 = vmatpush1.msra.mxu0 0.0
    %63 = vmatprep.subr.mxu0 0.0
    %64 = vmatpush1.msra.mxu0 0.0
    %65 = vmatprep.subr.mxu0 0.0
    %66 = vmatpush1.msra.mxu0 0.0
    %67 = vmatprep.subr.mxu0 0.0
    %68 = vmatpush1.msra.mxu0 0.0
    %69 = vmatprep.subr.mxu0 0.0
    %70 = vmatpush1.msra.mxu0 0.0
    %71 = vmatprep.subr.mxu0 0.0
    %72 = vmatpush1.msra.mxu0 0.0
    %73 = vmatprep.subr.mxu0 0.0
    %74 = vmatpush1.msra.mxu0 0.0
    %75 = vmatprep.subr.mxu0 0.0
    %76 = vmatpush1.msra.mxu0 0.0
    %77 = vmatprep.subr.mxu0 0.0
    %78 = vmatpush1.msra.mxu0 0.0
    %79 = vmatprep.subr.mxu0 0.0
    %80 = vmatpush1.msra.mxu0 0.0
    %81 = vmatprep.subr.mxu0 0.0
    %82 = vmatpush1.msra.mxu0 0.0
    %83 = vmatprep.subr.mxu0 0.0
    %84 = vmatpush1.msra.mxu0 0.0
    %85 = vmatprep.subr.mxu0 0.0
    %86 = vmatpush1.msra.mxu0 0.0
    %87 = vmatprep.subr.mxu0 0.0
    %88 = vmatpush1.msra.mxu0 0.0
    %89 = vmatprep.subr.mxu0 0.0
    %90 = vmatpush1.msra.mxu0 0.0
    %91 = vmatprep.subr.mxu0 0.0
    %92 = vmatpush1.msra.mxu0 0.0
    %93 = vmatprep.subr.mxu0 0.0
    %94 = vmatpush1.msra.mxu0 0.0
    %95 = vmatprep.subr.mxu0 0.0
    %96 = vmatpush1.msra.mxu0 0.0
    %97 = vmatprep.subr.mxu0 0.0
    %98 = vmatpush1.msra.mxu0 0.0
    %99 = vmatprep.subr.mxu0 0.0
    %100 = vmatpush1.msra.mxu0 0.0
    %101 = vmatprep.subr.mxu0 0.0
    %102 = vmatpush1.msra.mxu0 0.0
    %103 = vmatprep.subr.mxu0 0.0
    %104 = vmatpush1.msra.mxu0 0.0
    %105 = vmatprep.subr.mxu0 0.0
    %106 = vmatpush1.msra.mxu0 0.0
    %107 = vmatprep.mubr.f32.mxu0 0.0
    %108 = vmatmul.mubr.f32.gmra.mrb[0].mxu0 %v41
    %v109 = vpop.f32.mrb[0].mxu0
    %v110 = vadd.f32 %v37, %v109
    %v111 = vpop.f32.mrb[0].mxu0
    %112 = vdwg.mxu0
    %v113 = vmin.f32 %v110, 0.0
    %v114 = vmul.f32 %v113, 1.442695
    %v115 = vpow.pop %v114
    %v116 = vsub.f32 %v115, 1.0
    %v117 = vmul.f32 %v116, 1.6732632
    %vm118 = vcmp.gt.f32.partialorder %v110, 0.0
    %v119 = vsel %vm118, %v110, %v117
    %v120 = vmul.f32 %v119, 1.050701
    %v121 = vld [vmem:[%s3] sm:$0xff]
    %v122 = vld [vmem:[%s3 + $0x8] sm:$0xff]
    %v123 = vld [vmem:[%s3 + $0x10] sm:$0xff]
    %v124 = vld [vmem:[%s3 + $0x18] sm:$0xff]
    %v125 = vld [vmem:[%s3 + $0x20] sm:$0xff]
    %v126 = vld [vmem:[%s3 + $0x28] sm:$0xff]
    %v127 = vld [vmem:[%s3 + $0x30] sm:$0xff]
    %v128 = vld [vmem:[%s3 + $0x38] sm:$0xff]
    %v129 = vld [vmem:[%s4] sm:$0x1]
    %v131 = vlaneseq
    %v132 = vshrl.u32 %v131, 7
    %v133 = vsub.s32 0, %v132
    %v134 = vrot.slane %v129, %v133
    %vm136 = vcmask 523264
    %v138 = vsel %vm136, %v120, 0
    %140 = vmatprep.subr.mxu0 0.0
    %141 = vmatpush1.msra.mxu0 %v121
    %142 = vmatprep.subr.mxu0 0.0
    %143 = vmatpush1.msra.mxu0 %v122
    %144 = vmatprep.subr.mxu0 0.0
    %145 = vmatpush1.msra.mxu0 %v123
    %146 = vmatprep.subr.mxu0 0.0
    %147 = vmatpush1.msra.mxu0 %v124
    %148 = vmatprep.subr.mxu0 0.0
    %149 = vmatpush1.msra.mxu0 %v125
    %150 = vmatprep.subr.mxu0 0.0
    %151 = vmatpush1.msra.mxu0 %v126
    %152 = vmatprep.subr.mxu0 0.0
    %153 = vmatpush1.msra.mxu0 %v127
    %154 = vmatprep.subr.mxu0 0.0
    %155 = vmatpush1.msra.mxu0 %v128
    %156 = vmatprep.subr.mxu0 0.0
    %157 = vmatpush1.msra.mxu0 0.0
    %158 = vmatprep.subr.mxu0 0.0
    %159 = vmatpush1.msra.mxu0 0.0
    %160 = vmatprep.subr.mxu0 0.0
    %161 = vmatpush1.msra.mxu0 0.0
    %162 = vmatprep.subr.mxu0 0.0
    %163 = vmatpush1.msra.mxu0 0.0
    %164 = vmatprep.subr.mxu0 0.0
    %165 = vmatpush1.msra.mxu0 0.0
    %166 = vmatprep.subr.mxu0 0.0
    %167 = vmatpush1.msra.mxu0 0.0
    %168 = vmatprep.subr.mxu0 0.0
    %169 = vmatpush1.msra.mxu0 0.0
    %170 = vmatprep.subr.mxu0 0.0
    %171 = vmatpush1.msra.mxu0 0.0
    %172 = vmatprep.subr.mxu0 0.0
    %173 = vmatpush1.msra.mxu0 0.0
    %174 = vmatprep.subr.mxu0 0.0
    %175 = vmatpush1.msra.mxu0 0.0
    %176 = vmatprep.subr.mxu0 0.0
    %177 = vmatpush1.msra.mxu0 0.0
    %178 = vmatprep.subr.mxu0 0.0
    %179 = vmatpush1.msra.mxu0 0.0
    %180 = vmatprep.subr.mxu0 0.0
    %181 = vmatpush1.msra.mxu0 0.0
    %182 = vmatprep.subr.mxu0 0.0
    %183 = vmatpush1.msra.mxu0 0.0
    %184 = vmatprep.subr.mxu0 0.0
    %185 = vmatpush1.msra.mxu0 0.0
    %186 = vmatprep.subr.mxu0 0.0
    %187 = vmatpush1.msra.mxu0 0.0
    %188 = vmatprep.subr.mxu0 0.0
    %189 = vmatpush1.msra.mxu0 0.0
    %190 = vmatprep.subr.mxu0 0.0
    %191 = vmatpush1.msra.mxu0 0.0
    %192 = vmatprep.subr.mxu0 0.0
    %193 = vmatpush1.msra.mxu0 0.0
    %194 = vmatprep.subr.mxu0 0.0
    %195 = vmatpush1.msra.mxu0 0.0
    %196 = vmatprep.subr.mxu0 0.0
    %197 = vmatpush1.msra.mxu0 0.0
    %198 = vmatprep.subr.mxu0 0.0
    %199 = vmatpush1.msra.mxu0 0.0
    %200 = vmatprep.subr.mxu0 0.0
    %201 = vmatpush1.msra.mxu0 0.0
    %202 = vmatprep.subr.mxu0 0.0
    %203 = vmatpush1.msra.mxu0 0.0
    %204 = vmatprep.mubr.f32.mxu0 0.0
    %205 = vmatmul.mubr.f32.gmra.mrb[0].mxu0 %v138
    %v206 = vpop.f32.mrb[0].mxu0
    %v207 = vadd.f32 %v134, %v206
    %v208 = vpop.f32.mrb[0].mxu0
    %209 = vdwg.mxu0
    %v210 = vmin.f32 %v207, 0.0
    %v211 = vmul.f32 %v210, 1.442695
    %v212 = vpow.pop %v211
    %v213 = vsub.f32 %v212, 1.0
    %v214 = vmul.f32 %v213, 1.6732632
    %vm215 = vcmp.gt.f32.partialorder %v207, 0.0
    %v216 = vsel %vm215, %v207, %v214
    %v217 = vmul.f32 %v216, 1.050701
    %v218 = vld [vmem:[%s5] sm:$0xff]
    %v219 = vld [vmem:[%s5 + $0x8] sm:$0xff]
    %v220 = vld [vmem:[%s5 + $0x10] sm:$0xff]
    %v221 = vld [vmem:[%s5 + $0x18] sm:$0xff]
    %v222 = vld [vmem:[%s5 + $0x20] sm:$0xff]
    %v223 = vld [vmem:[%s5 + $0x28] sm:$0xff]
    %v224 = vld [vmem:[%s5 + $0x30] sm:$0xff]
    %v225 = vld [vmem:[%s5 + $0x38] sm:$0xff]
    %v226 = vld [vmem:[%s5 + $0x40] sm:$0xff]
    %v227 = vld [vmem:[%s5 + $0x48] sm:$0xff]
    %v228 = vld [vmem:[%s5 + $0x50] sm:$0xff]
    %v229 = vld [vmem:[%s5 + $0x58] sm:$0xff]
    %v230 = vld [vmem:[%s5 + $0x60] sm:$0xff]
    %v231 = vld [vmem:[%s5 + $0x68] sm:$0xff]
    %v232 = vld [vmem:[%s5 + $0x70] sm:$0xff]
    %v233 = vld [vmem:[%s5 + $0x78] sm:$0xff]
    %v234 = vld [vmem:[%s6] sm:$0x1]
    %v236 = vlaneseq
    %v237 = vshrl.u32 %v236, 7
    %v238 = vsub.s32 0, %v237
    %v239 = vrot.slane %v234, %v238
    %241 = vmatprep.subr.mxu0 0.0
    %242 = vmatpush1.msra.mxu0 %v218
    %243 = vmatprep.subr.mxu0 0.0
    %244 = vmatpush1.msra.mxu0 %v219
    %245 = vmatprep.subr.mxu0 0.0
    %246 = vmatpush1.msra.mxu0 %v220
    %247 = vmatprep.subr.mxu0 0.0
    %248 = vmatpush1.msra.mxu0 %v221
    %249 = vmatprep.subr.mxu0 0.0
    %250 = vmatpush1.msra.mxu0 %v222
    %251 = vmatprep.subr.mxu0 0.0
    %252 = vmatpush1.msra.mxu0 %v223
    %253 = vmatprep.subr.mxu0 0.0
    %254 = vmatpush1.msra.mxu0 %v224
    %255 = vmatprep.subr.mxu0 0.0
    %256 = vmatpush1.msra.mxu0 %v225
    %257 = vmatprep.subr.mxu0 0.0
    %258 = vmatpush1.msra.mxu0 %v226
    %259 = vmatprep.subr.mxu0 0.0
    %260 = vmatpush1.msra.mxu0 %v227
    %261 = vmatprep.subr.mxu0 0.0
    %262 = vmatpush1.msra.mxu0 %v228
    %263 = vmatprep.subr.mxu0 0.0
    %264 = vmatpush1.msra.mxu0 %v229
    %265 = vmatprep.subr.mxu0 0.0
    %266 = vmatpush1.msra.mxu0 %v230
    %267 = vmatprep.subr.mxu0 0.0
    %268 = vmatpush1.msra.mxu0 %v231
    %269 = vmatprep.subr.mxu0 0.0
    %270 = vmatpush1.msra.mxu0 %v232
    %271 = vmatprep.subr.mxu0 0.0
    %272 = vmatpush1.msra.mxu0 %v233
    %273 = vmatprep.subr.mxu0 0.0
    %274 = vmatpush1.msra.mxu0 0.0
    %275 = vmatprep.subr.mxu0 0.0
    %276 = vmatpush1.msra.mxu0 0.0
    %277 = vmatprep.subr.mxu0 0.0
    %278 = vmatpush1.msra.mxu0 0.0
    %279 = vmatprep.subr.mxu0 0.0
    %280 = vmatpush1.msra.mxu0 0.0
    %281 = vmatprep.subr.mxu0 0.0
    %282 = vmatpush1.msra.mxu0 0.0
    %283 = vmatprep.subr.mxu0 0.0
    %284 = vmatpush1.msra.mxu0 0.0
    %285 = vmatprep.subr.mxu0 0.0
    %286 = vmatpush1.msra.mxu0 0.0
    %287 = vmatprep.subr.mxu0 0.0
    %288 = vmatpush1.msra.mxu0 0.0
    %289 = vmatprep.subr.mxu0 0.0
    %290 = vmatpush1.msra.mxu0 0.0
    %291 = vmatprep.subr.mxu0 0.0
    %292 = vmatpush1.msra.mxu0 0.0
    %293 = vmatprep.subr.mxu0 0.0
    %294 = vmatpush1.msra.mxu0 0.0
    %295 = vmatprep.subr.mxu0 0.0
    %296 = vmatpush1.msra.mxu0 0.0
    %297 = vmatprep.subr.mxu0 0.0
    %298 = vmatpush1.msra.mxu0 0.0
    %299 = vmatprep.subr.mxu0 0.0
    %300 = vmatpush1.msra.mxu0 0.0
    %301 = vmatprep.subr.mxu0 0.0
    %302 = vmatpush1.msra.mxu0 0.0
    %303 = vmatprep.subr.mxu0 0.0
    %304 = vmatpush1.msra.mxu0 0.0
    %305 = vmatprep.mubr.f32.mxu0 0.0
    %306 = vmatmul.mubr.f32.gmra.mrb[0].mxu0 %v217
    %v307 = vpop.f32.mrb[0].mxu0
    %v308 = vadd.f32 %v239, %v307
    %v309 = vpop.f32.mrb[0].mxu0
    %310 = vdwg.mxu0
    %vm311 = vcmask 130048
    %312 = vst.msk [vmem:[#allocation2] sm:$0xff] %vm311, %v308
    // Predicated region
    $region30: #{tpu_custom_call.1} parent=1 // pred_check
      _
    $region31: #{tpu_custom_call.1} parent=1 // pred_check_branch
      %314 = sbr.rel (0) target = $region33
    $region32: #{tpu_custom_call.1} parent=1 // pred_region
      %s316 = ssub.s32 128, 128
      %317 = vsyncadd [#allocation3], %s316
      %s319 = sshll.u32 [#allocation2], 4
      %s320 = int_to_ptr.vmem [resolvable:$true] %s319
      %322 = dma.vmem_to_hbm [thread:$0]  %s320, 128, %s7, [#allocation3]
    $region33: #{tpu_custom_call.1} parent=1 // pred_fallthru
      _
    // Predicated region
    $region34: #{tpu_custom_call.1} parent=1 // pred_check
      _
    $region35: #{tpu_custom_call.1} parent=1 // pred_check_branch
      %324 = sbr.rel (0) target = $region37
    $region36: #{tpu_custom_call.1} parent=1 // pred_region
      %325 = dma.done [#allocation3], 128
    $region37: #{tpu_custom_call.1} parent=1 // pred_fallthru
      _
    %326 = vsyncpa [#allocation3], 1

</llo_original>
